<compile_context>
chip_gen: v5e
topology: v5e:2x2
jax: 0.10.0
libtpu: 0.0.40
codegen_flags: <defaults>
</compile_context>

<pallas_src>
import jax
import jax.numpy as jnp
from jax import lax
from jax.experimental import pallas as pl
from jax.experimental.pallas import tpu as pltpu

BN_EPS = 1e-5
TILE_M_MAX = 2048                      # lanes per grid step (multiple of 128)
VMEM_LIMIT = 32 * 1024 * 1024          # safe scoped limit on v5e/v6e/v7x
COMPUTE_DTYPE = jnp.float32            # jnp.bfloat16 on v5e/v6e for 2x Pt BW


def _round_up(x, m):
    return (x + m - 1) // m * m


# ----------------------------------------------------------------------------
# Pallas kernels
# ----------------------------------------------------------------------------
def _make_bn_relu_fused_kernel(m_valid: int, apply_relu: bool):
    """Single-pass conv + training-mode BN (+ReLU); full M in one block.

    Padded M columns of Pt are exactly zero, so they contribute 0 to the sum;
    the centered-variance term masks them out with a lane iota.  Conv bias is
    intentionally omitted: it cancels against the batch-mean subtraction.
    """
    inv_m = 1.0 / float(m_valid)

    def kernel(w_ref, p_ref, g_ref, beta_ref, o_ref):
        # (Cout_pad, K_pad) @ (K_pad, M_pad) -> (Cout_pad, M_pad); M in lanes.
        y = jnp.dot(w_ref[...], p_ref[...], preferred_element_type=jnp.float32)
        lane = lax.broadcasted_iota(jnp.int32, y.shape, 1)
        valid = lane < m_valid
        mean = jnp.sum(y, axis=1, keepdims=True) * inv_m
        d = jnp.where(valid, y - mean, 0.0)
        var = jnp.sum(d * d, axis=1, keepdims=True) * inv_m
        scale = g_ref[...] * lax.rsqrt(var + BN_EPS)
        shift = beta_ref[...] - mean * scale
        out = y * scale + shift
        if apply_relu:
            out = jnp.maximum(out, 0.0)
        o_ref[...] = out.astype(o_ref.dtype)

    return kernel


def _make_bias_kernel(apply_relu: bool):
    """Conv + bias (+ReLU); purely per-tile, grid over M is parallel."""
    def kernel(w_ref, p_ref, b_ref, o_ref):
        y = jnp.dot(w_ref[...], p_ref[...], preferred_element_type=jnp.float32)
        y = y + b_ref[...]
        if apply_relu:
            y = jnp.maximum(y, 0.0)
        o_ref[...] = y.astype(o_ref.dtype)
    return kernel


def _matmul_kernel(w_ref, p_ref, o_ref):
    """Plain W @ Pt tile (multi-tile BN path, phase A). Pt streamed once."""
    o_ref[...] = jnp.dot(w_ref[...], p_ref[...],
                         preferred_element_type=jnp.float32)


def _make_affine_kernel(apply_relu: bool):
    """Elementwise y*scale + shift (+ReLU) on the 8-row y (phase B)."""
    def kernel(y_ref, s_ref, t_ref, o_ref):
        out = y_ref[...] * s_ref[...] + t_ref[...]
        if apply_relu:
            out = jnp.maximum(out, 0.0)
        o_ref[...] = out.astype(o_ref.dtype)
    return kernel


# ----------------------------------------------------------------------------
# Fused layer wrapper (pallas_call)
# ----------------------------------------------------------------------------
def fused_conv_layer(pt, w_mat, bias, gamma, beta, M, apply_bn, apply_relu):
    """pt: (K, M) transposed im2col patches, w_mat: (Cout, K).

    Returns (Cout, M) float32 with M (=B*OH*OW) in the lane dimension.
    """
    K = pt.shape[0]
    Cout = w_mat.shape[0]

    Cout_pad = _round_up(Cout, 8)
    K_pad = _round_up(K, 8)
    tile_m = min(TILE_M_MAX, _round_up(M, 128))
    M_pad = _round_up(M, tile_m)
    num_m = M_pad // tile_m

    pt_p = jnp.pad(pt, ((0, K_pad - K), (0, M_pad - M))).astype(COMPUTE_DTYPE)
    w_p = jnp.pad(w_mat, ((0, Cout_pad - Cout), (0, K_pad - K))).astype(COMPUTE_DTYPE)

    cp_par = pltpu.CompilerParams(dimension_semantics=("parallel",),
                                  vmem_limit_bytes=VMEM_LIMIT)

    if not apply_bn:
        # No BN: purely per-tile, one parallel pass (any num_m).
        b_p = jnp.pad(bias.reshape(Cout, 1), ((0, Cout_pad - Cout), (0, 0)))
        y = pl.pallas_call(
            _make_bias_kernel(apply_relu),
            out_shape=jax.ShapeDtypeStruct((Cout_pad, M_pad), jnp.float32),
            grid=(num_m,),
            in_specs=[
                pl.BlockSpec((Cout_pad, K_pad), lambda m: (0, 0)),
                pl.BlockSpec((K_pad, tile_m), lambda m: (0, m)),
                pl.BlockSpec((Cout_pad, 1), lambda m: (0, 0)),
            ],
            out_specs=pl.BlockSpec((Cout_pad, tile_m), lambda m: (0, m)),
            compiler_params=cp_par,
        )(w_p, pt_p, b_p)
        return y[:Cout, :M]

    g_p = jnp.pad(gamma.reshape(Cout, 1), ((0, Cout_pad - Cout), (0, 0)))
    be_p = jnp.pad(beta.reshape(Cout, 1), ((0, Cout_pad - Cout), (0, 0)))

    if num_m == 1:
        # Whole M fits in one tile: fully fused conv+BN+ReLU, Pt read once.
        y = pl.pallas_call(
            _make_bn_relu_fused_kernel(M, apply_relu),
            out_shape=jax.ShapeDtypeStruct((Cout_pad, M_pad), jnp.float32),
            grid=(1,),
            in_specs=[
                pl.BlockSpec((Cout_pad, K_pad), lambda i: (0, 0)),
                pl.BlockSpec((K_pad, M_pad), lambda i: (0, 0)),
                pl.BlockSpec((Cout_pad, 1), lambda i: (0, 0)),
                pl.BlockSpec((Cout_pad, 1), lambda i: (0, 0)),
            ],
            out_specs=pl.BlockSpec((Cout_pad, M_pad), lambda i: (0, 0)),
            compiler_params=pltpu.CompilerParams(
                dimension_semantics=("arbitrary",),
                vmem_limit_bytes=VMEM_LIMIT),
        )(w_p, pt_p, g_p, be_p)
        return y[:Cout, :M]

    # Multi-tile BN path: (A) parallel tiled matmul (Pt streamed once),
    # tiny centered stats reduction on the 8-row y in JAX, (B) parallel
    # tiled affine+ReLU.  No sequential grid axis, no Pt re-read.
    y = pl.pallas_call(
        _matmul_kernel,
        out_shape=jax.ShapeDtypeStruct((Cout_pad, M_pad), jnp.float32),
        grid=(num_m,),
        in_specs=[
            pl.BlockSpec((Cout_pad, K_pad), lambda m: (0, 0)),
            pl.BlockSpec((K_pad, tile_m), lambda m: (0, m)),
        ],
        out_specs=pl.BlockSpec((Cout_pad, tile_m), lambda m: (0, m)),
        compiler_params=cp_par,
    )(w_p, pt_p)

    yv = y[:Cout, :M]
    mean = jnp.mean(yv, axis=1, keepdims=True)
    var = jnp.mean((yv - mean) ** 2, axis=1, keepdims=True)      # centered
    scale = gamma.reshape(Cout, 1) * lax.rsqrt(var + BN_EPS)
    shift = beta.reshape(Cout, 1) - mean * scale
    scale_p = jnp.pad(scale, ((0, Cout_pad - Cout), (0, 0)))
    shift_p = jnp.pad(shift, ((0, Cout_pad - Cout), (0, 0)))

    out = pl.pallas_call(
        _make_affine_kernel(apply_relu),
        out_shape=jax.ShapeDtypeStruct((Cout_pad, M_pad), jnp.float32),
        grid=(num_m,),
        in_specs=[
            pl.BlockSpec((Cout_pad, tile_m), lambda m: (0, m)),
            pl.BlockSpec((Cout_pad, 1), lambda m: (0, 0)),
            pl.BlockSpec((Cout_pad, 1), lambda m: (0, 0)),
        ],
        out_specs=pl.BlockSpec((Cout_pad, tile_m), lambda m: (0, m)),
        compiler_params=cp_par,
    )(y, scale_p, shift_p)
    return out[:Cout, :M]


# ----------------------------------------------------------------------------
# JAX glue: transposed im2col, conv / conv-transpose blocks, nearest interp
# ----------------------------------------------------------------------------
def im2col_t(x, k, s):
    """x: (C, B, H, W) -> Pt: (C*k*k, B*OH*OW); rows ordered (c, kh, kw)."""
    C, B, H, W = x.shape
    OH = (H - k) // s + 1
    OW = (W - k) // s + 1
    cols = []
    for kh in range(k):
        for kw in range(k):
            cols.append(x[:, :, kh:kh + s * (OH - 1) + 1:s,
                             kw:kw + s * (OW - 1) + 1:s])       # (C, B, OH, OW)
    pt = jnp.stack(cols, axis=1)                                # (C, k*k, B, OH, OW)
    return pt.reshape(C * k * k, B * OH * OW), OH, OW


def conv2d_block(x, w, b, gamma, beta, stride, apply_bn, apply_relu):
    """x: (Cin, B, H, W), w: (Cout, Cin, k, k) -> (Cout, B, OH, OW)."""
    Cin, B, H, W = x.shape
    Cout, _, k, _ = w.shape
    pt, OH, OW = im2col_t(x, k, stride)
    w_mat = w.reshape(Cout, Cin * k * k)
    y = fused_conv_layer(pt, w_mat, b, gamma, beta, B * OH * OW,
                         apply_bn, apply_relu)                  # (Cout, M)
    return y.reshape(Cout, B, OH, OW)


def conv_transpose2d_block(x, wt, b, gamma, beta, stride, apply_bn, apply_relu):
    """x: (Cin, B, H, W), wt: (Cin, Cout, k, k) (PyTorch ConvTranspose2d layout).

    ConvTranspose2d(stride=s, padding=0) == zero-dilate input by s, pad k-1 on
    each side, stride-1 conv with spatially flipped kernel and swapped in/out
    channels.
    """
    Cin, B, H, W = x.shape
    k = wt.shape[2]
    xd = jnp.zeros((Cin, B, (H - 1) * stride + 1, (W - 1) * stride + 1), x.dtype)
    xd = xd.at[:, :, ::stride, ::stride].set(x)
    xp = jnp.pad(xd, ((0, 0), (0, 0), (k - 1, k - 1), (k - 1, k - 1)))
    w_conv = jnp.flip(wt, axis=(2, 3)).transpose(1, 0, 2, 3)    # (Cout, Cin, k, k)
    return conv2d_block(xp, w_conv, b, gamma, beta, 1, apply_bn, apply_relu)


def interp_nearest(x, out_h, out_w):
    """Nearest interpolation over the last two (spatial) axes.

    Matches F.interpolate(mode='nearest'): src = floor(dst * in/out).  Uses
    identity / repeat for integer factors; gather only as a fallback.
    """
    H, W = x.shape[2], x.shape[3]
    if out_h == H and out_w == W:
        return x
    if out_h % H == 0 and out_w % W == 0:
        x = jnp.repeat(x, out_h // H, axis=2)
        return jnp.repeat(x, out_w // W, axis=3)
    hi = jnp.floor(jnp.arange(out_h) * (H / out_h)).astype(jnp.int32)
    wi = jnp.floor(jnp.arange(out_w) * (W / out_w)).astype(jnp.int32)
    return x[:, :, hi, :][:, :, :, wi]


# ----------------------------------------------------------------------------
# Model: parameter construction + forward (mirrors DCUnet.__init__/forward)
# ----------------------------------------------------------------------------
LAYERS_PARAMS = [
    {'chanels': 4, 'kernel': 3, 'stride': 2},
    {'chanels': 8, 'kernel': 3, 'stride': 2},
    {'chanels': 4, 'kernel': 3, 'stride': 2},
    {'chanels': 1, 'kernel': 3, 'stride': 2},
]


def build_params(layers_params, key):
    n = len(layers_params)
    params = []
    for i, lp in enumerate(layers_params):
        is_have_connect = i >= n // 2 + 1
        is_decoder = i >= n // 2
        if i > 0:
            cin = layers_params[i - 1]['chanels']
            if is_have_connect:
                cin += layers_params[n - i - 1]['chanels']
        else:
            cin = 1
        cout = lp['chanels']
        k = lp['kernel']
        key, k1, k2 = jax.random.split(key, 3)
        if is_decoder:
            w = jax.random.normal(k1, (cin, cout, k, k), jnp.float32) * 0.1
        else:
            w = jax.random.normal(k1, (cout, cin, k, k), jnp.float32) * 0.1
        b = jax.random.normal(k2, (cout,), jnp.float32) * 0.1
        params.append(dict(
            w=w, b=b,
            gamma=jnp.ones((cout,), jnp.float32),   # BatchNorm2d default init
            beta=jnp.zeros((cout,), jnp.float32),
            stride=lp['stride'],
            is_decoder=is_decoder,
            apply_bn=(i != n - 1),
            apply_relu=(i != n - 1),
        ))
    return params


def dcunet_forward(x, params):
    """x: (B, 1, H, W) float32 -> (B, 1, H, W) float32 (iscomplex=False)."""
    n = len(params)
    in_h, in_w = x.shape[2], x.shape[3]
    xc = jnp.transpose(x, (1, 0, 2, 3))            # (C, B, H, W) layout
    outs = []
    for i, p in enumerate(params):
        is_have_connect = i >= n // 2 + 1
        if is_have_connect:
            connect_x = outs[n - i - 1]
            prev_x = interp_nearest(xc, connect_x.shape[2], connect_x.shape[3])
            xc = jnp.concatenate((connect_x, prev_x), axis=0)
        if p['is_decoder']:
            xc = conv_transpose2d_block(xc, p['w'], p['b'], p['gamma'], p['beta'],
                                        p['stride'], p['apply_bn'], p['apply_relu'])
        else:
            xc = conv2d_block(xc, p['w'], p['b'], p['gamma'], p['beta'],
                              p['stride'], p['apply_bn'], p['apply_relu'])
        if not is_have_connect:
            outs.append(xc)
    xc = interp_nearest(xc, in_h, in_w)
    return jnp.transpose(xc, (1, 0, 2, 3))          # back to (B, C, H, W)


# ----------------------------------------------------------------------------
# Pure-JAX reference (lax.conv, NCHW) for correctness check
# ----------------------------------------------------------------------------
def _ref_bn_relu(y, gamma, beta, apply_bn, apply_relu):
    if apply_bn:
        m = jnp.mean(y, axis=(0, 2, 3), keepdims=True)
        v = jnp.mean((y - m) ** 2, axis=(0, 2, 3), keepdims=True)
        y = (y - m) / jnp.sqrt(v + BN_EPS) * gamma[None, :, None, None] \
            + beta[None, :, None, None]
    if apply_relu:
        y = jnp.maximum(y, 0.0)
    return y


def ref_forward(x, params):
    n = len(params)
    in_h, in_w = x.shape[2], x.shape[3]
    outs = []
    for i, p in enumerate(params):
        is_have_connect = i >= n // 2 + 1
        if is_have_connect:
            connect_x = outs[n - i - 1]
            prev_x = interp_nearest(x, connect_x.shape[2], connect_x.shape[3])
            x = jnp.concatenate((connect_x, prev_x), axis=1)
        if p['is_decoder']:
            k = p['w'].shape[2]
            w_conv = jnp.flip(p['w'], axis=(2, 3)).transpose(1, 0, 2, 3)
            y = lax.conv_general_dilated(
                x, w_conv, (1, 1), [(k - 1, k - 1), (k - 1, k - 1)],
                lhs_dilation=(p['stride'], p['stride']),
                dimension_numbers=('NCHW', 'OIHW', 'NCHW'))
        else:
            y = lax.conv_general_dilated(
                x, p['w'], (p['stride'], p['stride']), 'VALID',
                dimension_numbers=('NCHW', 'OIHW', 'NCHW'))
        y = y + p['b'][None, :, None, None]
        x = _ref_bn_relu(y, p['gamma'], p['beta'], p['apply_bn'], p['apply_relu'])
        if not is_have_connect:
            outs.append(x)
    return interp_nearest(x, in_h, in_w)


# ----------------------------------------------------------------------------
if __name__ == "__main__":
    key = jax.random.PRNGKey(0)
    key_x, key_p = jax.random.split(key)
    x = jax.random.normal(key_x, (2, 1, 16, 16), jnp.float32)

    params = build_params(LAYERS_PARAMS, key_p)

    # jit the whole forward so the inter-layer glue (im2col stack/pad/reshape,
    # dilation scatter, concat, interp) is fused by XLA instead of dispatched
    # op-by-op; per-layer control flow stays Python (params are closed over).
    fwd = jax.jit(lambda xx: dcunet_forward(xx, params))

    out = fwd(x)
    out = jax.block_until_ready(out)

    ref = jax.block_until_ready(ref_forward(x, params))
    assert out.shape == (2, 1, 16, 16), out.shape
    assert jnp.allclose(out, ref, rtol=1e-4, atol=1e-4), \
        float(jnp.max(jnp.abs(out - ref)))

    print("KERNEL_OK")
</pallas_src>

<mosaic_0001>
module attributes {stable_mosaic.version = 11 : i64} {
  func.func @kernel(%arg0: i32, %arg1: memref<8x16xf32, #tpu.memory_space<vmem>>, %arg2: memref<16x128xf32, #tpu.memory_space<vmem>>, %arg3: memref<8x1xf32, #tpu.memory_space<vmem>>, %arg4: memref<8x1xf32, #tpu.memory_space<vmem>>, %arg5: memref<8x128xf32, #tpu.memory_space<vmem>>) attributes {dimension_semantics = [#tpu.dimension_semantics<arbitrary>], iteration_bounds = array<i64: 1>, scalar_prefetch = 0 : i64, scratch_operands = 0 : i64, tpu.core_type = #tpu.core_type<tc>, window_params = [{pipeline_mode = #tpu.pipeline_mode<synchronous>, transform_indices = @transform_0, window_bounds = array<i64: 8, 16>}, {pipeline_mode = #tpu.pipeline_mode<synchronous>, transform_indices = @transform_1, window_bounds = array<i64: 16, 128>}, {pipeline_mode = #tpu.pipeline_mode<synchronous>, transform_indices = @transform_2, window_bounds = array<i64: 8, 1>}, {pipeline_mode = #tpu.pipeline_mode<synchronous>, transform_indices = @transform_3, window_bounds = array<i64: 8, 1>}, {pipeline_mode = #tpu.pipeline_mode<synchronous>, transform_indices = @transform_4, window_bounds = array<i64: 8, 128>}]} {
    %c0 = arith.constant 0 : index
    %c0_0 = arith.constant 0 : index
    %0 = vector.load %arg1[%c0, %c0_0] : memref<8x16xf32, #tpu.memory_space<vmem>>, vector<8x16xf32>
    %c0_1 = arith.constant 0 : index
    %c0_2 = arith.constant 0 : index
    %1 = vector.load %arg2[%c0_1, %c0_2] : memref<16x128xf32, #tpu.memory_space<vmem>>, vector<16x128xf32>
    %cst = arith.constant dense<0.000000e+00> : vector<8x128xf32>
    %2 = tpu.matmul %0, %1, %cst {dimension_numbers = #tpu.dot_dimension_numbers<[1], [0], [0], [1], [0, 0, 1, 1], [], []>} : vector<8x16xf32>, vector<16x128xf32>, vector<8x128xf32> -> vector<8x128xf32>
    %3 = tpu.iota {dimensions = array<i32: 1>} : vector<8x128xi32>
    %c98_i32 = arith.constant 98 : i32
    %4 = vector.broadcast %c98_i32 : i32 to vector<8x128xi32>
    %5 = arith.cmpi slt, %3, %4 : vector<8x128xi32>
    %cst_3 = arith.constant dense<0.000000e+00> : vector<8xf32>
    %6 = vector.multi_reduction <add>, %2, %cst_3 [1] : vector<8x128xf32> to vector<8xf32>
    %7 = vector.shape_cast %6 : vector<8xf32> to vector<8x1xf32>
    %cst_4 = arith.constant 0.0102040814 : f32
    %8 = vector.broadcast %cst_4 : f32 to vector<8x1xf32>
    %9 = arith.mulf %7, %8 : vector<8x1xf32>
    %10 = vector.broadcast %9 : vector<8x1xf32> to vector<8x128xf32>
    %11 = arith.subf %2, %10 : vector<8x128xf32>
    %cst_5 = arith.constant 0.000000e+00 : f32
    %12 = vector.broadcast %cst_5 : f32 to vector<8x128xf32>
    %13 = arith.select %5, %11, %12 : vector<8x128xi1>, vector<8x128xf32>
    %14 = arith.mulf %13, %13 : vector<8x128xf32>
    %cst_6 = arith.constant dense<0.000000e+00> : vector<8xf32>
    %15 = vector.multi_reduction <add>, %14, %cst_6 [1] : vector<8x128xf32> to vector<8xf32>
    %16 = vector.shape_cast %15 : vector<8xf32> to vector<8x1xf32>
    %cst_7 = arith.constant 0.0102040814 : f32
    %17 = vector.broadcast %cst_7 : f32 to vector<8x1xf32>
    %18 = arith.mulf %16, %17 : vector<8x1xf32>
    %c0_8 = arith.constant 0 : index
    %c0_9 = arith.constant 0 : index
    %19 = vector.load %arg3[%c0_8, %c0_9] : memref<8x1xf32, #tpu.memory_space<vmem>>, vector<8x1xf32>
    %cst_10 = arith.constant 9.99999974E-6 : f32
    %20 = vector.broadcast %cst_10 : f32 to vector<8x1xf32>
    %21 = arith.addf %18, %20 : vector<8x1xf32>
    %22 = math.rsqrt %21 : vector<8x1xf32>
    %23 = arith.mulf %19, %22 : vector<8x1xf32>
    %c0_11 = arith.constant 0 : index
    %c0_12 = arith.constant 0 : index
    %24 = vector.load %arg4[%c0_11, %c0_12] : memref<8x1xf32, #tpu.memory_space<vmem>>, vector<8x1xf32>
    %25 = arith.mulf %9, %23 : vector<8x1xf32>
    %26 = arith.subf %24, %25 : vector<8x1xf32>
    %27 = vector.broadcast %23 : vector<8x1xf32> to vector<8x128xf32>
    %28 = arith.mulf %2, %27 : vector<8x128xf32>
    %29 = vector.broadcast %26 : vector<8x1xf32> to vector<8x128xf32>
    %30 = arith.addf %28, %29 : vector<8x128xf32>
    %cst_13 = arith.constant 0.000000e+00 : f32
    %31 = vector.broadcast %cst_13 : f32 to vector<8x128xf32>
    %32 = arith.maximumf %30, %31 : vector<8x128xf32>
    %c0_14 = arith.constant 0 : index
    %c0_15 = arith.constant 0 : index
    %33 = vector.load %arg5[%c0_14, %c0_15] : memref<8x128xf32, #tpu.memory_space<vmem>>, vector<8x128xf32>
    tpu.vector_store %arg5[%c0_14, %c0_15], %32 {strides = array<i32>} : memref<8x128xf32, #tpu.memory_space<vmem>>, vector<8x128xf32>,
    return
  }
  func.func @transform_0(%arg0: i32) -> (i32, i32) {
    %c0_i32 = arith.constant 0 : i32
    %c0_i32_0 = arith.constant 0 : i32
    %c0_i32_1 = arith.constant 0 : i32
    return %c0_i32, %c0_i32_0 : i32, i32
  }
  func.func @transform_1(%arg0: i32) -> (i32, i32) {
    %c0_i32 = arith.constant 0 : i32
    %c0_i32_0 = arith.constant 0 : i32
    %c0_i32_1 = arith.constant 0 : i32
    return %c0_i32, %c0_i32_0 : i32, i32
  }
  func.func @transform_2(%arg0: i32) -> (i32, i32) {
    %c0_i32 = arith.constant 0 : i32
    %c0_i32_0 = arith.constant 0 : i32
    %c0_i32_1 = arith.constant 0 : i32
    return %c0_i32, %c0_i32_0 : i32, i32
  }
  func.func @transform_3(%arg0: i32) -> (i32, i32) {
    %c0_i32 = arith.constant 0 : i32
    %c0_i32_0 = arith.constant 0 : i32
    %c0_i32_1 = arith.constant 0 : i32
    return %c0_i32, %c0_i32_0 : i32, i32
  }
  func.func @transform_4(%arg0: i32) -> (i32, i32) {
    %c0_i32 = arith.constant 0 : i32
    %c0_i32_0 = arith.constant 0 : i32
    %c0_i32_1 = arith.constant 0 : i32
    return %c0_i32, %c0_i32_0 : i32, i32
  }
}

module attributes {stable_mosaic.version = 11 : i64} {
  func.func @kernel(%arg0: i32, %arg1: memref<8x40xf32, #tpu.memory_space<vmem>>, %arg2: memref<40x128xf32, #tpu.memory_space<vmem>>, %arg3: memref<8x1xf32, #tpu.memory_space<vmem>>, %arg4: memref<8x1xf32, #tpu.memory_space<vmem>>, %arg5: memref<8x128xf32, #tpu.memory_space<vmem>>) attributes {dimension_semantics = [#tpu.dimension_semantics<arbitrary>], iteration_bounds = array<i64: 1>, scalar_prefetch = 0 : i64, scratch_operands = 0 : i64, tpu.core_type = #tpu.core_type<tc>, window_params = [{pipeline_mode = #tpu.pipeline_mode<synchronous>, transform_indices = @transform_0, window_bounds = array<i64: 8, 40>}, {pipeline_mode = #tpu.pipeline_mode<synchronous>, transform_indices = @transform_1, window_bounds = array<i64: 40, 128>}, {pipeline_mode = #tpu.pipeline_mode<synchronous>, transform_indices = @transform_2, window_bounds = array<i64: 8, 1>}, {pipeline_mode = #tpu.pipeline_mode<synchronous>, transform_indices = @transform_3, window_bounds = array<i64: 8, 1>}, {pipeline_mode = #tpu.pipeline_mode<synchronous>, transform_indices = @transform_4, window_bounds = array<i64: 8, 128>}]} {
    %c0 = arith.constant 0 : index
    %c0_0 = arith.constant 0 : index
    %0 = vector.load %arg1[%c0, %c0_0] : memref<8x40xf32, #tpu.memory_space<vmem>>, vector<8x40xf32>
    %c0_1 = arith.constant 0 : index
    %c0_2 = arith.constant 0 : index
    %1 = vector.load %arg2[%c0_1, %c0_2] : memref<40x128xf32, #tpu.memory_space<vmem>>, vector<40x128xf32>
    %cst = arith.constant dense<0.000000e+00> : vector<8x128xf32>
    %2 = tpu.matmul %0, %1, %cst {dimension_numbers = #tpu.dot_dimension_numbers<[1], [0], [0], [1], [0, 0, 1, 1], [], []>} : vector<8x40xf32>, vector<40x128xf32>, vector<8x128xf32> -> vector<8x128xf32>
    %3 = tpu.iota {dimensions = array<i32: 1>} : vector<8x128xi32>
    %c18_i32 = arith.constant 18 : i32
    %4 = vector.broadcast %c18_i32 : i32 to vector<8x128xi32>
    %5 = arith.cmpi slt, %3, %4 : vector<8x128xi32>
    %cst_3 = arith.constant dense<0.000000e+00> : vector<8xf32>
    %6 = vector.multi_reduction <add>, %2, %cst_3 [1] : vector<8x128xf32> to vector<8xf32>
    %7 = vector.shape_cast %6 : vector<8xf32> to vector<8x1xf32>
    %cst_4 = arith.constant 0.055555556 : f32
    %8 = vector.broadcast %cst_4 : f32 to vector<8x1xf32>
    %9 = arith.mulf %7, %8 : vector<8x1xf32>
    %10 = vector.broadcast %9 : vector<8x1xf32> to vector<8x128xf32>
    %11 = arith.subf %2, %10 : vector<8x128xf32>
    %cst_5 = arith.constant 0.000000e+00 : f32
    %12 = vector.broadcast %cst_5 : f32 to vector<8x128xf32>
    %13 = arith.select %5, %11, %12 : vector<8x128xi1>, vector<8x128xf32>
    %14 = arith.mulf %13, %13 : vector<8x128xf32>
    %cst_6 = arith.constant dense<0.000000e+00> : vector<8xf32>
    %15 = vector.multi_reduction <add>, %14, %cst_6 [1] : vector<8x128xf32> to vector<8xf32>
    %16 = vector.shape_cast %15 : vector<8xf32> to vector<8x1xf32>
    %cst_7 = arith.constant 0.055555556 : f32
    %17 = vector.broadcast %cst_7 : f32 to vector<8x1xf32>
    %18 = arith.mulf %16, %17 : vector<8x1xf32>
    %c0_8 = arith.constant 0 : index
    %c0_9 = arith.constant 0 : index
    %19 = vector.load %arg3[%c0_8, %c0_9] : memref<8x1xf32, #tpu.memory_space<vmem>>, vector<8x1xf32>
    %cst_10 = arith.constant 9.99999974E-6 : f32
    %20 = vector.broadcast %cst_10 : f32 to vector<8x1xf32>
    %21 = arith.addf %18, %20 : vector<8x1xf32>
    %22 = math.rsqrt %21 : vector<8x1xf32>
    %23 = arith.mulf %19, %22 : vector<8x1xf32>
    %c0_11 = arith.constant 0 : index
    %c0_12 = arith.constant 0 : index
    %24 = vector.load %arg4[%c0_11, %c0_12] : memref<8x1xf32, #tpu.memory_space<vmem>>, vector<8x1xf32>
    %25 = arith.mulf %9, %23 : vector<8x1xf32>
    %26 = arith.subf %24, %25 : vector<8x1xf32>
    %27 = vector.broadcast %23 : vector<8x1xf32> to vector<8x128xf32>
    %28 = arith.mulf %2, %27 : vector<8x128xf32>
    %29 = vector.broadcast %26 : vector<8x1xf32> to vector<8x128xf32>
    %30 = arith.addf %28, %29 : vector<8x128xf32>
    %cst_13 = arith.constant 0.000000e+00 : f32
    %31 = vector.broadcast %cst_13 : f32 to vector<8x128xf32>
    %32 = arith.maximumf %30, %31 : vector<8x128xf32>
    %c0_14 = arith.constant 0 : index
    %c0_15 = arith.constant 0 : index
    %33 = vector.load %arg5[%c0_14, %c0_15] : memref<8x128xf32, #tpu.memory_space<vmem>>, vector<8x128xf32>
    tpu.vector_store %arg5[%c0_14, %c0_15], %32 {strides = array<i32>} : memref<8x128xf32, #tpu.memory_space<vmem>>, vector<8x128xf32>,
    return
  }
  func.func @transform_0(%arg0: i32) -> (i32, i32) {
    %c0_i32 = arith.constant 0 : i32
    %c0_i32_0 = arith.constant 0 : i32
    %c0_i32_1 = arith.constant 0 : i32
    return %c0_i32, %c0_i32_0 : i32, i32
  }
  func.func @transform_1(%arg0: i32) -> (i32, i32) {
    %c0_i32 = arith.constant 0 : i32
    %c0_i32_0 = arith.constant 0 : i32
    %c0_i32_1 = arith.constant 0 : i32
    return %c0_i32, %c0_i32_0 : i32, i32
  }
  func.func @transform_2(%arg0: i32) -> (i32, i32) {
    %c0_i32 = arith.constant 0 : i32
    %c0_i32_0 = arith.constant 0 : i32
    %c0_i32_1 = arith.constant 0 : i32
    return %c0_i32, %c0_i32_0 : i32, i32
  }
  func.func @transform_3(%arg0: i32) -> (i32, i32) {
    %c0_i32 = arith.constant 0 : i32
    %c0_i32_0 = arith.constant 0 : i32
    %c0_i32_1 = arith.constant 0 : i32
    return %c0_i32, %c0_i32_0 : i32, i32
  }
  func.func @transform_4(%arg0: i32) -> (i32, i32) {
    %c0_i32 = arith.constant 0 : i32
    %c0_i32_0 = arith.constant 0 : i32
    %c0_i32_1 = arith.constant 0 : i32
    return %c0_i32, %c0_i32_0 : i32, i32
  }
}

module attributes {stable_mosaic.version = 11 : i64} {
  func.func @kernel(%arg0: i32, %arg1: memref<8x72xf32, #tpu.memory_space<vmem>>, %arg2: memref<72x128xf32, #tpu.memory_space<vmem>>, %arg3: memref<8x1xf32, #tpu.memory_space<vmem>>, %arg4: memref<8x1xf32, #tpu.memory_space<vmem>>, %arg5: memref<8x128xf32, #tpu.memory_space<vmem>>) attributes {dimension_semantics = [#tpu.dimension_semantics<arbitrary>], iteration_bounds = array<i64: 1>, scalar_prefetch = 0 : i64, scratch_operands = 0 : i64, tpu.core_type = #tpu.core_type<tc>, window_params = [{pipeline_mode = #tpu.pipeline_mode<synchronous>, transform_indices = @transform_0, window_bounds = array<i64: 8, 72>}, {pipeline_mode = #tpu.pipeline_mode<synchronous>, transform_indices = @transform_1, window_bounds = array<i64: 72, 128>}, {pipeline_mode = #tpu.pipeline_mode<synchronous>, transform_indices = @transform_2, window_bounds = array<i64: 8, 1>}, {pipeline_mode = #tpu.pipeline_mode<synchronous>, transform_indices = @transform_3, window_bounds = array<i64: 8, 1>}, {pipeline_mode = #tpu.pipeline_mode<synchronous>, transform_indices = @transform_4, window_bounds = array<i64: 8, 128>}]} {
    %c0 = arith.constant 0 : index
    %c0_0 = arith.constant 0 : index
    %0 = vector.load %arg1[%c0, %c0_0] : memref<8x72xf32, #tpu.memory_space<vmem>>, vector<8x72xf32>
    %c0_1 = arith.constant 0 : index
    %c0_2 = arith.constant 0 : index
    %1 = vector.load %arg2[%c0_1, %c0_2] : memref<72x128xf32, #tpu.memory_space<vmem>>, vector<72x128xf32>
    %cst = arith.constant dense<0.000000e+00> : vector<8x128xf32>
    %2 = tpu.matmul %0, %1, %cst {dimension_numbers = #tpu.dot_dimension_numbers<[1], [0], [0], [1], [0, 0, 1, 1], [], []>} : vector<8x72xf32>, vector<72x128xf32>, vector<8x128xf32> -> vector<8x128xf32>
    %3 = tpu.iota {dimensions = array<i32: 1>} : vector<8x128xi32>
    %c98_i32 = arith.constant 98 : i32
    %4 = vector.broadcast %c98_i32 : i32 to vector<8x128xi32>
    %5 = arith.cmpi slt, %3, %4 : vector<8x128xi32>
    %cst_3 = arith.constant dense<0.000000e+00> : vector<8xf32>
    %6 = vector.multi_reduction <add>, %2, %cst_3 [1] : vector<8x128xf32> to vector<8xf32>
    %7 = vector.shape_cast %6 : vector<8xf32> to vector<8x1xf32>
    %cst_4 = arith.constant 0.0102040814 : f32
    %8 = vector.broadcast %cst_4 : f32 to vector<8x1xf32>
    %9 = arith.mulf %7, %8 : vector<8x1xf32>
    %10 = vector.broadcast %9 : vector<8x1xf32> to vector<8x128xf32>
    %11 = arith.subf %2, %10 : vector<8x128xf32>
    %cst_5 = arith.constant 0.000000e+00 : f32
    %12 = vector.broadcast %cst_5 : f32 to vector<8x128xf32>
    %13 = arith.select %5, %11, %12 : vector<8x128xi1>, vector<8x128xf32>
    %14 = arith.mulf %13, %13 : vector<8x128xf32>
    %cst_6 = arith.constant dense<0.000000e+00> : vector<8xf32>
    %15 = vector.multi_reduction <add>, %14, %cst_6 [1] : vector<8x128xf32> to vector<8xf32>
    %16 = vector.shape_cast %15 : vector<8xf32> to vector<8x1xf32>
    %cst_7 = arith.constant 0.0102040814 : f32
    %17 = vector.broadcast %cst_7 : f32 to vector<8x1xf32>
    %18 = arith.mulf %16, %17 : vector<8x1xf32>
    %c0_8 = arith.constant 0 : index
    %c0_9 = arith.constant 0 : index
    %19 = vector.load %arg3[%c0_8, %c0_9] : memref<8x1xf32, #tpu.memory_space<vmem>>, vector<8x1xf32>
    %cst_10 = arith.constant 9.99999974E-6 : f32
    %20 = vector.broadcast %cst_10 : f32 to vector<8x1xf32>
    %21 = arith.addf %18, %20 : vector<8x1xf32>
    %22 = math.rsqrt %21 : vector<8x1xf32>
    %23 = arith.mulf %19, %22 : vector<8x1xf32>
    %c0_11 = arith.constant 0 : index
    %c0_12 = arith.constant 0 : index
    %24 = vector.load %arg4[%c0_11, %c0_12] : memref<8x1xf32, #tpu.memory_space<vmem>>, vector<8x1xf32>
    %25 = arith.mulf %9, %23 : vector<8x1xf32>
    %26 = arith.subf %24, %25 : vector<8x1xf32>
    %27 = vector.broadcast %23 : vector<8x1xf32> to vector<8x128xf32>
    %28 = arith.mulf %2, %27 : vector<8x128xf32>
    %29 = vector.broadcast %26 : vector<8x1xf32> to vector<8x128xf32>
    %30 = arith.addf %28, %29 : vector<8x128xf32>
    %cst_13 = arith.constant 0.000000e+00 : f32
    %31 = vector.broadcast %cst_13 : f32 to vector<8x128xf32>
    %32 = arith.maximumf %30, %31 : vector<8x128xf32>
    %c0_14 = arith.constant 0 : index
    %c0_15 = arith.constant 0 : index
    %33 = vector.load %arg5[%c0_14, %c0_15] : memref<8x128xf32, #tpu.memory_space<vmem>>, vector<8x128xf32>
    tpu.vector_store %arg5[%c0_14, %c0_15], %32 {strides = array<i32>} : memref<8x128xf32, #tpu.memory_space<vmem>>, vector<8x128xf32>,
    return
  }
  func.func @transform_0(%arg0: i32) -> (i32, i32) {
    %c0_i32 = arith.constant 0 : i32
    %c0_i32_0 = arith.constant 0 : i32
    %c0_i32_1 = arith.constant 0 : i32
    return %c0_i32, %c0_i32_0 : i32, i32
  }
  func.func @transform_1(%arg0: i32) -> (i32, i32) {
    %c0_i32 = arith.constant 0 : i32
    %c0_i32_0 = arith.constant 0 : i32
    %c0_i32_1 = arith.constant 0 : i32
    return %c0_i32, %c0_i32_0 : i32, i32
  }
  func.func @transform_2(%arg0: i32) -> (i32, i32) {
    %c0_i32 = arith.constant 0 : i32
    %c0_i32_0 = arith.constant 0 : i32
    %c0_i32_1 = arith.constant 0 : i32
    return %c0_i32, %c0_i32_0 : i32, i32
  }
  func.func @transform_3(%arg0: i32) -> (i32, i32) {
    %c0_i32 = arith.constant 0 : i32
    %c0_i32_0 = arith.constant 0 : i32
    %c0_i32_1 = arith.constant 0 : i32
    return %c0_i32, %c0_i32_0 : i32, i32
  }
  func.func @transform_4(%arg0: i32) -> (i32, i32) {
    %c0_i32 = arith.constant 0 : i32
    %c0_i32_0 = arith.constant 0 : i32
    %c0_i32_1 = arith.constant 0 : i32
    return %c0_i32, %c0_i32_0 : i32, i32
  }
}

module attributes {stable_mosaic.version = 11 : i64} {
  func.func @kernel(%arg0: i32, %arg1: memref<8x72xf32, #tpu.memory_space<vmem>>, %arg2: memref<72x512xf32, #tpu.memory_space<vmem>>, %arg3: memref<8x1xf32, #tpu.memory_space<vmem>>, %arg4: memref<8x512xf32, #tpu.memory_space<vmem>>) attributes {dimension_semantics = [#tpu.dimension_semantics<parallel>], iteration_bounds = array<i64: 1>, scalar_prefetch = 0 : i64, scratch_operands = 0 : i64, tpu.core_type = #tpu.core_type<tc>, window_params = [{pipeline_mode = #tpu.pipeline_mode<synchronous>, transform_indices = @transform_0, window_bounds = array<i64: 8, 72>}, {transform_indices = @transform_1, window_bounds = array<i64: 72, 512>}, {pipeline_mode = #tpu.pipeline_mode<synchronous>, transform_indices = @transform_2, window_bounds = array<i64: 8, 1>}, {transform_indices = @transform_3, window_bounds = array<i64: 8, 512>}]} {
    %c0 = arith.constant 0 : index
    %c0_0 = arith.constant 0 : index
    %0 = vector.load %arg1[%c0, %c0_0] : memref<8x72xf32, #tpu.memory_space<vmem>>, vector<8x72xf32>
    %c0_1 = arith.constant 0 : index
    %c0_2 = arith.constant 0 : index
    %1 = vector.load %arg2[%c0_1, %c0_2] : memref<72x512xf32, #tpu.memory_space<vmem>>, vector<72x512xf32>
    %cst = arith.constant dense<0.000000e+00> : vector<8x512xf32>
    %2 = tpu.matmul %0, %1, %cst {dimension_numbers = #tpu.dot_dimension_numbers<[1], [0], [0], [1], [0, 0, 1, 1], [], []>} : vector<8x72xf32>, vector<72x512xf32>, vector<8x512xf32> -> vector<8x512xf32>
    %c0_3 = arith.constant 0 : index
    %c0_4 = arith.constant 0 : index
    %3 = vector.load %arg3[%c0_3, %c0_4] : memref<8x1xf32, #tpu.memory_space<vmem>>, vector<8x1xf32>
    %4 = vector.broadcast %3 : vector<8x1xf32> to vector<8x512xf32>
    %5 = arith.addf %2, %4 : vector<8x512xf32>
    %c0_5 = arith.constant 0 : index
    %c0_6 = arith.constant 0 : index
    %6 = vector.load %arg4[%c0_5, %c0_6] : memref<8x512xf32, #tpu.memory_space<vmem>>, vector<8x512xf32>
    tpu.vector_store %arg4[%c0_5, %c0_6], %5 {strides = array<i32>} : memref<8x512xf32, #tpu.memory_space<vmem>>, vector<8x512xf32>,
    return
  }
  func.func @transform_0(%arg0: i32) -> (i32, i32) {
    %c0_i32 = arith.constant 0 : i32
    %c0_i32_0 = arith.constant 0 : i32
    %c0_i32_1 = arith.constant 0 : i32
    return %c0_i32, %c0_i32_0 : i32, i32
  }
  func.func @transform_1(%arg0: i32) -> (i32, i32) {
    %c0_i32 = arith.constant 0 : i32
    %c0_i32_0 = arith.constant 0 : i32
    return %c0_i32, %arg0 : i32, i32
  }
  func.func @transform_2(%arg0: i32) -> (i32, i32) {
    %c0_i32 = arith.constant 0 : i32
    %c0_i32_0 = arith.constant 0 : i32
    %c0_i32_1 = arith.constant 0 : i32
    return %c0_i32, %c0_i32_0 : i32, i32
  }
  func.func @transform_3(%arg0: i32) -> (i32, i32) {
    %c0_i32 = arith.constant 0 : i32
    %c0_i32_0 = arith.constant 0 : i32
    return %c0_i32, %arg0 : i32, i32
  }
}

</mosaic_0001>

<llo_original>
// kernel: _lambda_.4
$region0: #{_lambda_.4}
  #allocation0 [shape = 'u32[]', space=smem, size = 0x4, offset = 0x4, fixed_abs, tag = 'smem constant byte address 0x4 - core index']
  #allocation1 [shape = 'u32[72,128]{1,0:T(1,128)}', space=vmem, size = 0x9000, scoped, tag = 'internal scratch']
  %s0 = inlined_call_operand.hbm [shape: f32[8,16], index: 0, kind: input, shape index: {}]
  %s1 = inlined_call_operand.vmem [shape: f32[16,128], index: 1, kind: input, shape index: {}]
  %s2 = inlined_call_operand.vmem [shape: f32[8,1], index: 2, kind: input, shape index: {}]
  %s3 = inlined_call_operand.vmem [shape: f32[8,1], index: 3, kind: input, shape index: {}]
  %s4 = inlined_call_operand.vmem [shape: f32[8,128], index: 4, kind: output, shape index: {}]
  %s5 = sld [smem:[#allocation0]]
  $region30: #{_lambda_.4} parent=0
    _
  %s7 = ssub.s32 1, %s5
  %s8 = scalar_select 0, %s7, %s5
  $region1: #{_lambda_.4} parent=0
    #allocation2 [shape = 'u8[4096]{0}', space=vmem, size = 0x1000, scoped, tag = 'input window, operand 0, single buffered']
    #allocation3 [shape = 's32[1]{0}', space=sflag, size = 0x4, scoped, tag = 'scoped memory for _lambda_.4']
    %9 = vsyncpa [#allocation3], 0
    // Predicated region
    $region2: #{_lambda_.4} parent=1 // pred_check
      _
    $region3: #{_lambda_.4} parent=1 // pred_check_branch
      %11 = sbr.rel (0) target = $region5
    $region4: #{_lambda_.4} parent=1 // pred_region
      %13 = vsyncadd [#allocation3], 0
      %s15 = sshll.u32 %s0, 4
      %s16 = int_to_ptr.hbm [resolvable:$true] %s15
      %s17 = sshll.u32 [#allocation2], 4
      %s18 = int_to_ptr.vmem [resolvable:$true] %s17
      %20 = dma.hbm_to_vmem [thread:$0]  %s16, 128, %s18, [#allocation3]
    $region5: #{_lambda_.4} parent=1 // pred_fallthru
      _
    // Predicated region
    $region6: #{_lambda_.4} parent=1 // pred_check
      _
    $region7: #{_lambda_.4} parent=1 // pred_check_branch
      %22 = sbr.rel (0) target = $region9
    $region8: #{_lambda_.4} parent=1 // pred_region
      _
    $region9: #{_lambda_.4} parent=1 // pred_fallthru
      _
    // Predicated region
    $region10: #{_lambda_.4} parent=1 // pred_check
      _
    $region11: #{_lambda_.4} parent=1 // pred_check_branch
      %24 = sbr.rel (0) target = $region13
    $region12: #{_lambda_.4} parent=1 // pred_region
      _
    $region13: #{_lambda_.4} parent=1 // pred_fallthru
      _
    // Predicated region
    $region14: #{_lambda_.4} parent=1 // pred_check
      _
    $region15: #{_lambda_.4} parent=1 // pred_check_branch
      %26 = sbr.rel (0) target = $region17
    $region16: #{_lambda_.4} parent=1 // pred_region
      _
    $region17: #{_lambda_.4} parent=1 // pred_fallthru
      _
    // Predicated region
    $region18: #{_lambda_.4} parent=1 // pred_check
      _
    $region19: #{_lambda_.4} parent=1 // pred_check_branch
      %28 = sbr.rel (0) target = $region21
    $region20: #{_lambda_.4} parent=1 // pred_region
      %30 = dma.done [#allocation3], 128
    $region21: #{_lambda_.4} parent=1 // pred_fallthru
      _
    %v31 = vld [vmem:[#allocation2] sm:$0xff]
    %v32 = vld [vmem:[%s1] sm:$0xff]
    %v33 = vld [vmem:[%s1 + $0x8] sm:$0xff]
    %vm34 = vcmask 130048
    %v36 = vsel %vm34, %v31, 0
    %38 = vmatpush.msra.mxu0 0.0
    %39 = vmatpush.msra.mxu0 0.0
    %40 = vmatpush.msra.mxu0 0.0
    %41 = vmatpush.msra.mxu0 0.0
    %42 = vmatpush.msra.mxu0 0.0
    %43 = vmatpush.msra.mxu0 0.0
    %44 = vmatpush.msra.mxu0 0.0
    %45 = vmatpush.msra.mxu0 0.0
    %46 = vmatpush.msra.mxu0 0.0
    %47 = vmatpush.msra.mxu0 0.0
    %48 = vmatpush.msra.mxu0 0.0
    %49 = vmatpush.msra.mxu0 0.0
    %50 = vmatpush.msra.mxu0 0.0
    %51 = vmatpush.msra.mxu0 0.0
    %52 = vmatpush.msra.mxu0 %v33
    %53 = vmatpush.msra.mxu0 %v32
    %54 = vmatmul.f32.gmra.mxu0 %v36
    %v55 = vpop.f32.mrf.mxu0
    %v56 = vadd.f32 0.0, %v55
    %57 = vdwg.mxu0
    %v58 = vlaneseq
    %v59 = vand.u32 %v58, 127
    %vm60 = vcmp.lt.s32.totalorder %v59, 98
    %61 = vadd.xlane.f32.xlu0 %v56
    %v62 = vpop.xlane.xlu0 %61
    %v63 = vmul.f32 %v62, 0.010204081
    %v64 = vsub.f32 %v56, %v63
    %v65 = vsel %vm60, %v64, 0.0
    %v66 = vmul.f32 %v65, %v65
    %67 = vadd.xlane.f32.xlu0 %v66
    %v68 = vpop.xlane.xlu0 %67
    %v69 = vmul.f32 %v68, 0.010204081
    %v70 = vld [vmem:[%s2] sm:$0xff]
    %v71 = vadd.f32 %v69, 1e-05
    %v72 = vrsqrt.pop %v71
    %v73 = vmul.f32 %v72, %v71
    %v74 = vmul.f32 %v73, %v72
    %v75 = vmul.f32 0.5, %v74
    %v76 = vsub.f32 1.5, %v75
    %v77 = vmul.f32 %v72, %v76
    %vm78 = vweird.f32 %v71
    %vm79 = vweird.f32 %v72
    %vm80 = vmor %vm78, %vm79
    %v81 = vsel %vm80, %v72, %v77
    %v82 = vmul.f32 %v70, %v81
    %v83 = vld [vmem:[%s3] sm:$0xff]
    %v84 = vmul.f32 %v63, %v82
    %v85 = vsub.f32 %v83, %v84
    %87 = vset.pattern.permute.xlu0 0
    %88 = vperm.xlu0 %87, %v82
    %v89 = vpop.permute.xlu0 %88
    %v91 = vmul.f32 %v56, %v89
    %93 = vset.pattern.permute.xlu0 0
    %94 = vperm.xlu0 %93, %v85
    %v95 = vpop.permute.xlu0 %94
    %v97 = vadd.f32 %v91, %v95
    %v98 = vmax.f32 %v97, 0.0
    %99 = vst [vmem:[%s4] sm:$0xff] %v98
    // Predicated region
    $region22: #{_lambda_.4} parent=1 // pred_check
      _
    $region23: #{_lambda_.4} parent=1 // pred_check_branch
      %101 = sbr.rel (0) target = $region25
    $region24: #{_lambda_.4} parent=1 // pred_region
      _
    $region25: #{_lambda_.4} parent=1 // pred_fallthru
      _
    // Predicated region
    $region26: #{_lambda_.4} parent=1 // pred_check
      _
    $region27: #{_lambda_.4} parent=1 // pred_check_branch
      %103 = sbr.rel (0) target = $region29
    $region28: #{_lambda_.4} parent=1 // pred_region
      _
    $region29: #{_lambda_.4} parent=1 // pred_fallthru
      _
    %104 = vsyncpa [#allocation3], 1

// kernel: _lambda_.5
$region0: #{_lambda_.5}
  #allocation0 [shape = 'u32[]', space=smem, size = 0x4, offset = 0x4, fixed_abs, tag = 'smem constant byte address 0x4 - core index']
  #allocation1 [shape = 'u32[72,128]{1,0:T(1,128)}', space=vmem, size = 0x9000, scoped, tag = 'internal scratch']
  %s0 = inlined_call_operand.hbm [shape: f32[8,40], index: 0, kind: input, shape index: {}]
  %s1 = inlined_call_operand.vmem [shape: f32[40,128], index: 1, kind: input, shape index: {}]
  %s2 = inlined_call_operand.vmem [shape: f32[8,1], index: 2, kind: input, shape index: {}]
  %s3 = inlined_call_operand.vmem [shape: f32[8,1], index: 3, kind: input, shape index: {}]
  %s4 = inlined_call_operand.vmem [shape: f32[8,128], index: 4, kind: output, shape index: {}]
  %s5 = sld [smem:[#allocation0]]
  $region30: #{_lambda_.5} parent=0
    _
  %s7 = ssub.s32 1, %s5
  %s8 = scalar_select 0, %s7, %s5
  $region1: #{_lambda_.5} parent=0
    #allocation2 [shape = 'u8[4096]{0}', space=vmem, size = 0x1000, scoped, tag = 'input window, operand 0, single buffered']
    #allocation3 [shape = 's32[1]{0}', space=sflag, size = 0x4, scoped, tag = 'scoped memory for _lambda_.5']
    %9 = vsyncpa [#allocation3], 0
    // Predicated region
    $region2: #{_lambda_.5} parent=1 // pred_check
      _
    $region3: #{_lambda_.5} parent=1 // pred_check_branch
      %11 = sbr.rel (0) target = $region5
    $region4: #{_lambda_.5} parent=1 // pred_region
      %13 = vsyncadd [#allocation3], 0
      %s15 = sshll.u32 %s0, 4
      %s16 = int_to_ptr.hbm [resolvable:$true] %s15
      %s17 = sshll.u32 [#allocation2], 4
      %s18 = int_to_ptr.vmem [resolvable:$true] %s17
      %20 = dma.hbm_to_vmem [thread:$0]  %s16, 128, %s18, [#allocation3]
    $region5: #{_lambda_.5} parent=1 // pred_fallthru
      _
    // Predicated region
    $region6: #{_lambda_.5} parent=1 // pred_check
      _
    $region7: #{_lambda_.5} parent=1 // pred_check_branch
      %22 = sbr.rel (0) target = $region9
    $region8: #{_lambda_.5} parent=1 // pred_region
      _
    $region9: #{_lambda_.5} parent=1 // pred_fallthru
      _
    // Predicated region
    $region10: #{_lambda_.5} parent=1 // pred_check
      _
    $region11: #{_lambda_.5} parent=1 // pred_check_branch
      %24 = sbr.rel (0) target = $region13
    $region12: #{_lambda_.5} parent=1 // pred_region
      _
    $region13: #{_lambda_.5} parent=1 // pred_fallthru
      _
    // Predicated region
    $region14: #{_lambda_.5} parent=1 // pred_check
      _
    $region15: #{_lambda_.5} parent=1 // pred_check_branch
      %26 = sbr.rel (0) target = $region17
    $region16: #{_lambda_.5} parent=1 // pred_region
      _
    $region17: #{_lambda_.5} parent=1 // pred_fallthru
      _
    // Predicated region
    $region18: #{_lambda_.5} parent=1 // pred_check
      _
    $region19: #{_lambda_.5} parent=1 // pred_check_branch
      %28 = sbr.rel (0) target = $region21
    $region20: #{_lambda_.5} parent=1 // pred_region
      %30 = dma.done [#allocation3], 128
    $region21: #{_lambda_.5} parent=1 // pred_fallthru
      _
    %v31 = vld [vmem:[#allocation2] sm:$0xff]
    %v32 = vld [vmem:[%s1] sm:$0xff]
    %v33 = vld [vmem:[%s1 + $0x8] sm:$0xff]
    %v34 = vld [vmem:[%s1 + $0x10] sm:$0xff]
    %v35 = vld [vmem:[%s1 + $0x18] sm:$0xff]
    %v36 = vld [vmem:[%s1 + $0x20] sm:$0xff]
    %vm37 = vcmask 326656
    %v39 = vsel %vm37, %v31, 0
    %41 = vmatpush.msra.mxu0 0.0
    %42 = vmatpush.msra.mxu0 0.0
    %43 = vmatpush.msra.mxu0 0.0
    %44 = vmatpush.msra.mxu0 0.0
    %45 = vmatpush.msra.mxu0 0.0
    %46 = vmatpush.msra.mxu0 0.0
    %47 = vmatpush.msra.mxu0 0.0
    %48 = vmatpush.msra.mxu0 0.0
    %49 = vmatpush.msra.mxu0 0.0
    %50 = vmatpush.msra.mxu0 0.0
    %51 = vmatpush.msra.mxu0 0.0
    %52 = vmatpush.msra.mxu0 %v36
    %53 = vmatpush.msra.mxu0 %v35
    %54 = vmatpush.msra.mxu0 %v34
    %55 = vmatpush.msra.mxu0 %v33
    %56 = vmatpush.msra.mxu0 %v32
    %57 = vmatmul.f32.gmra.mxu0 %v39
    %v58 = vpop.f32.mrf.mxu0
    %v59 = vadd.f32 0.0, %v58
    %60 = vdwg.mxu0
    %v61 = vlaneseq
    %v62 = vand.u32 %v61, 127
    %vm63 = vcmp.lt.s32.totalorder %v62, 18
    %64 = vadd.xlane.f32.xlu0 %v59
    %v65 = vpop.xlane.xlu0 %64
    %v66 = vmul.f32 %v65, 0.055555556
    %v67 = vsub.f32 %v59, %v66
    %v68 = vsel %vm63, %v67, 0.0
    %v69 = vmul.f32 %v68, %v68
    %70 = vadd.xlane.f32.xlu0 %v69
    %v71 = vpop.xlane.xlu0 %70
    %v72 = vmul.f32 %v71, 0.055555556
    %v73 = vld [vmem:[%s2] sm:$0xff]
    %v74 = vadd.f32 %v72, 1e-05
    %v75 = vrsqrt.pop %v74
    %v76 = vmul.f32 %v75, %v74
    %v77 = vmul.f32 %v76, %v75
    %v78 = vmul.f32 0.5, %v77
    %v79 = vsub.f32 1.5, %v78
    %v80 = vmul.f32 %v75, %v79
    %vm81 = vweird.f32 %v74
    %vm82 = vweird.f32 %v75
    %vm83 = vmor %vm81, %vm82
    %v84 = vsel %vm83, %v75, %v80
    %v85 = vmul.f32 %v73, %v84
    %v86 = vld [vmem:[%s3] sm:$0xff]
    %v87 = vmul.f32 %v66, %v85
    %v88 = vsub.f32 %v86, %v87
    %90 = vset.pattern.permute.xlu0 0
    %91 = vperm.xlu0 %90, %v85
    %v92 = vpop.permute.xlu0 %91
    %v94 = vmul.f32 %v59, %v92
    %96 = vset.pattern.permute.xlu0 0
    %97 = vperm.xlu0 %96, %v88
    %v98 = vpop.permute.xlu0 %97
    %v100 = vadd.f32 %v94, %v98
    %v101 = vmax.f32 %v100, 0.0
    %102 = vst [vmem:[%s4] sm:$0xff] %v101
    // Predicated region
    $region22: #{_lambda_.5} parent=1 // pred_check
      _
    $region23: #{_lambda_.5} parent=1 // pred_check_branch
      %104 = sbr.rel (0) target = $region25
    $region24: #{_lambda_.5} parent=1 // pred_region
      _
    $region25: #{_lambda_.5} parent=1 // pred_fallthru
      _
    // Predicated region
    $region26: #{_lambda_.5} parent=1 // pred_check
      _
    $region27: #{_lambda_.5} parent=1 // pred_check_branch
      %106 = sbr.rel (0) target = $region29
    $region28: #{_lambda_.5} parent=1 // pred_region
      _
    $region29: #{_lambda_.5} parent=1 // pred_fallthru
      _
    %107 = vsyncpa [#allocation3], 1

// kernel: _lambda_.6
$region0: #{_lambda_.6}
  #allocation0 [shape = 'u32[]', space=smem, size = 0x4, offset = 0x4, fixed_abs, tag = 'smem constant byte address 0x4 - core index']
  #allocation1 [shape = 'u32[72,128]{1,0:T(1,128)}', space=vmem, size = 0x9000, scoped, tag = 'internal scratch']
  %s0 = inlined_call_operand.vmem [shape: f32[8,72], index: 0, kind: input, shape index: {}]
  %s1 = inlined_call_operand.vmem [shape: f32[72,128], index: 1, kind: input, shape index: {}]
  %s2 = inlined_call_operand.vmem [shape: f32[8,1], index: 2, kind: input, shape index: {}]
  %s3 = inlined_call_operand.vmem [shape: f32[8,1], index: 3, kind: input, shape index: {}]
  %s4 = inlined_call_operand.vmem [shape: f32[8,128], index: 4, kind: output, shape index: {}]
  %s5 = sld [smem:[#allocation0]]
  $region26: #{_lambda_.6} parent=0
    _
  %s7 = ssub.s32 1, %s5
  %s8 = scalar_select 0, %s7, %s5
  // Predicated region
  $region2: #{_lambda_.6} parent=0 // pred_check
    _
  $region3: #{_lambda_.6} parent=0 // pred_check_branch
    %10 = sbr.rel (0) target = $region5
  $region4: #{_lambda_.6} parent=0 // pred_region
    _
  $region5: #{_lambda_.6} parent=0 // pred_fallthru
    _
  // Predicated region
  $region6: #{_lambda_.6} parent=0 // pred_check
    _
  $region7: #{_lambda_.6} parent=0 // pred_check_branch
    %12 = sbr.rel (0) target = $region9
  $region8: #{_lambda_.6} parent=0 // pred_region
    _
  $region9: #{_lambda_.6} parent=0 // pred_fallthru
    _
  // Predicated region
  $region10: #{_lambda_.6} parent=0 // pred_check
    _
  $region11: #{_lambda_.6} parent=0 // pred_check_branch
    %14 = sbr.rel (0) target = $region13
  $region12: #{_lambda_.6} parent=0 // pred_region
    _
  $region13: #{_lambda_.6} parent=0 // pred_fallthru
    _
  // Predicated region
  $region14: #{_lambda_.6} parent=0 // pred_check
    _
  $region15: #{_lambda_.6} parent=0 // pred_check_branch
    %16 = sbr.rel (0) target = $region17
  $region16: #{_lambda_.6} parent=0 // pred_region
    _
  $region17: #{_lambda_.6} parent=0 // pred_fallthru
    _
  %v17 = vld [vmem:[%s0] sm:$0xff]
  %v18 = vld [vmem:[%s1] sm:$0xff]
  %v19 = vld [vmem:[%s1 + $0x8] sm:$0xff]
  %v20 = vld [vmem:[%s1 + $0x10] sm:$0xff]
  %v21 = vld [vmem:[%s1 + $0x18] sm:$0xff]
  %v22 = vld [vmem:[%s1 + $0x20] sm:$0xff]
  %v23 = vld [vmem:[%s1 + $0x28] sm:$0xff]
  %v24 = vld [vmem:[%s1 + $0x30] sm:$0xff]
  %v25 = vld [vmem:[%s1 + $0x38] sm:$0xff]
  %v26 = vld [vmem:[%s1 + $0x40] sm:$0xff]
  %vm27 = vcmask 588800
  %v29 = vsel %vm27, %v17, 0
  %31 = vmatpush.msra.mxu0 0.0
  %32 = vmatpush.msra.mxu0 0.0
  %33 = vmatpush.msra.mxu0 0.0
  %34 = vmatpush.msra.mxu0 0.0
  %35 = vmatpush.msra.mxu0 0.0
  %36 = vmatpush.msra.mxu0 0.0
  %37 = vmatpush.msra.mxu0 0.0
  %38 = vmatpush.msra.mxu0 %v26
  %39 = vmatpush.msra.mxu0 %v25
  %40 = vmatpush.msra.mxu0 %v24
  %41 = vmatpush.msra.mxu0 %v23
  %42 = vmatpush.msra.mxu0 %v22
  %43 = vmatpush.msra.mxu0 %v21
  %44 = vmatpush.msra.mxu0 %v20
  %45 = vmatpush.msra.mxu0 %v19
  %46 = vmatpush.msra.mxu0 %v18
  %47 = vmatmul.f32.gmra.mxu0 %v29
  %v48 = vpop.f32.mrf.mxu0
  %v49 = vadd.f32 0.0, %v48
  %50 = vdwg.mxu0
  %v51 = vlaneseq
  %v52 = vand.u32 %v51, 127
  %vm53 = vcmp.lt.s32.totalorder %v52, 98
  %54 = vadd.xlane.f32.xlu0 %v49
  %v55 = vpop.xlane.xlu0 %54
  %v56 = vmul.f32 %v55, 0.010204081
  %v57 = vsub.f32 %v49, %v56
  %v58 = vsel %vm53, %v57, 0.0
  %v59 = vmul.f32 %v58, %v58
  %60 = vadd.xlane.f32.xlu0 %v59
  %v61 = vpop.xlane.xlu0 %60
  %v62 = vmul.f32 %v61, 0.010204081
  %v63 = vld [vmem:[%s2] sm:$0xff]
  %v64 = vadd.f32 %v62, 1e-05
  %v65 = vrsqrt.pop %v64
  %v66 = vmul.f32 %v65, %v64
  %v67 = vmul.f32 %v66, %v65
  %v68 = vmul.f32 0.5, %v67
  %v69 = vsub.f32 1.5, %v68
  %v70 = vmul.f32 %v65, %v69
  %vm71 = vweird.f32 %v64
  %vm72 = vweird.f32 %v65
  %vm73 = vmor %vm71, %vm72
  %v74 = vsel %vm73, %v65, %v70
  %v75 = vmul.f32 %v63, %v74
  %v76 = vld [vmem:[%s3] sm:$0xff]
  %v77 = vmul.f32 %v56, %v75
  %v78 = vsub.f32 %v76, %v77
  %80 = vset.pattern.permute.xlu0 0
  %81 = vperm.xlu0 %80, %v75
  %v82 = vpop.permute.xlu0 %81
  %v84 = vmul.f32 %v49, %v82
  %86 = vset.pattern.permute.xlu0 0
  %87 = vperm.xlu0 %86, %v78
  %v88 = vpop.permute.xlu0 %87
  %v90 = vadd.f32 %v84, %v88
  %v91 = vmax.f32 %v90, 0.0
  %92 = vst [vmem:[%s4] sm:$0xff] %v91
  // Predicated region
  $region18: #{_lambda_.6} parent=0 // pred_check
    _
  $region19: #{_lambda_.6} parent=0 // pred_check_branch
    %94 = sbr.rel (0) target = $region21
  $region20: #{_lambda_.6} parent=0 // pred_region
    _
  $region21: #{_lambda_.6} parent=0 // pred_fallthru
    _
  // Predicated region
  $region22: #{_lambda_.6} parent=0 // pred_check
    _
  $region23: #{_lambda_.6} parent=0 // pred_check_branch
    %96 = sbr.rel (0) target = $region25
  $region24: #{_lambda_.6} parent=0 // pred_region
    _
  $region25: #{_lambda_.6} parent=0 // pred_fallthru
    _

// kernel: _lambda_.7
$region0: #{_lambda_.7}
  #allocation0 [shape = 'u32[]', space=smem, size = 0x4, offset = 0x4, fixed_abs, tag = 'smem constant byte address 0x4 - core index']
  #allocation1 [shape = 'u32[72,128]{1,0:T(1,128)}', space=vmem, size = 0x9000, scoped, tag = 'internal scratch']
  %s0 = inlined_call_operand.vmem [shape: f32[8,72], index: 0, kind: input, shape index: {}]
  %s1 = inlined_call_operand.vmem [shape: f32[72,512], index: 1, kind: input, shape index: {}]
  %s2 = inlined_call_operand.vmem [shape: f32[8,1], index: 2, kind: input, shape index: {}]
  %s3 = inlined_call_operand.vmem [shape: f32[8,512], index: 3, kind: output, shape index: {}]
  %s4 = sld [smem:[#allocation0]]
  $region22: #{_lambda_.7} parent=0
    _
  %s6 = ssub.s32 1, %s4
  %s7 = scalar_select 0, %s6, %s4
  // Predicated region
  $region2: #{_lambda_.7} parent=0 // pred_check
    _
  $region3: #{_lambda_.7} parent=0 // pred_check_branch
    %9 = sbr.rel (0) target = $region5
  $region4: #{_lambda_.7} parent=0 // pred_region
    _
  $region5: #{_lambda_.7} parent=0 // pred_fallthru
    _
  // Predicated region
  $region6: #{_lambda_.7} parent=0 // pred_check
    _
  $region7: #{_lambda_.7} parent=0 // pred_check_branch
    %11 = sbr.rel (0) target = $region9
  $region8: #{_lambda_.7} parent=0 // pred_region
    _
  $region9: #{_lambda_.7} parent=0 // pred_fallthru
    _
  // Predicated region
  $region10: #{_lambda_.7} parent=0 // pred_check
    _
  $region11: #{_lambda_.7} parent=0 // pred_check_branch
    %13 = sbr.rel (0) target = $region13
  $region12: #{_lambda_.7} parent=0 // pred_region
    _
  $region13: #{_lambda_.7} parent=0 // pred_fallthru
    _
  %v14 = vld [vmem:[%s0] sm:$0xff]
  %v15 = vld [vmem:[%s1] sm:$0xff]
  %v16 = vld [vmem:[%s1 + $0x8] sm:$0xff]
  %v17 = vld [vmem:[%s1 + $0x10] sm:$0xff]
  %v18 = vld [vmem:[%s1 + $0x18] sm:$0xff]
  %v19 = vld [vmem:[%s1 + $0x20] sm:$0xff]
  %v20 = vld [vmem:[%s1 + $0x28] sm:$0xff]
  %v21 = vld [vmem:[%s1 + $0x30] sm:$0xff]
  %v22 = vld [vmem:[%s1 + $0x38] sm:$0xff]
  %v23 = vld [vmem:[%s1 + $0x40] sm:$0xff]
  %v24 = vld [vmem:[%s1 + $0x48] sm:$0xff]
  %v25 = vld [vmem:[%s1 + $0x50] sm:$0xff]
  %v26 = vld [vmem:[%s1 + $0x58] sm:$0xff]
  %v27 = vld [vmem:[%s1 + $0x60] sm:$0xff]
  %v28 = vld [vmem:[%s1 + $0x68] sm:$0xff]
  %v29 = vld [vmem:[%s1 + $0x70] sm:$0xff]
  %v30 = vld [vmem:[%s1 + $0x78] sm:$0xff]
  %v31 = vld [vmem:[%s1 + $0x80] sm:$0xff]
  %v32 = vld [vmem:[%s1 + $0x88] sm:$0xff]
  %v33 = vld [vmem:[%s1 + $0x90] sm:$0xff]
  %v34 = vld [vmem:[%s1 + $0x98] sm:$0xff]
  %v35 = vld [vmem:[%s1 + $0xa0] sm:$0xff]
  %v36 = vld [vmem:[%s1 + $0xa8] sm:$0xff]
  %v37 = vld [vmem:[%s1 + $0xb0] sm:$0xff]
  %v38 = vld [vmem:[%s1 + $0xb8] sm:$0xff]
  %v39 = vld [vmem:[%s1 + $0xc0] sm:$0xff]
  %v40 = vld [vmem:[%s1 + $0xc8] sm:$0xff]
  %v41 = vld [vmem:[%s1 + $0xd0] sm:$0xff]
  %v42 = vld [vmem:[%s1 + $0xd8] sm:$0xff]
  %v43 = vld [vmem:[%s1 + $0xe0] sm:$0xff]
  %v44 = vld [vmem:[%s1 + $0xe8] sm:$0xff]
  %v45 = vld [vmem:[%s1 + $0xf0] sm:$0xff]
  %v46 = vld [vmem:[%s1 + $0xf8] sm:$0xff]
  %v47 = vld [vmem:[%s1 + $0x100] sm:$0xff]
  %v48 = vld [vmem:[%s1 + $0x108] sm:$0xff]
  %v49 = vld [vmem:[%s1 + $0x110] sm:$0xff]
  %v50 = vld [vmem:[%s1 + $0x118] sm:$0xff]
  %v51 = vld [vmem:[%s2] sm:$0xff]
  %53 = vset.pattern.permute.xlu0 0
  %54 = vperm.xlu0 %53, %v51
  %v55 = vpop.permute.xlu0 %54
  %vm57 = vcmask 588800
  %v59 = vsel %vm57, %v14, 0
  %61 = vmatpush.msra.mxu0 0.0
  %62 = vmatpush.msra.mxu0 0.0
  %63 = vmatpush.msra.mxu0 0.0
  %64 = vmatpush.msra.mxu0 0.0
  %65 = vmatpush.msra.mxu0 0.0
  %66 = vmatpush.msra.mxu0 0.0
  %67 = vmatpush.msra.mxu0 0.0
  %68 = vmatpush.msra.mxu0 %v47
  %69 = vmatpush.msra.mxu0 %v43
  %70 = vmatpush.msra.mxu0 %v39
  %71 = vmatpush.msra.mxu0 %v35
  %72 = vmatpush.msra.mxu0 %v31
  %73 = vmatpush.msra.mxu0 %v27
  %74 = vmatpush.msra.mxu0 %v23
  %75 = vmatpush.msra.mxu0 %v19
  %76 = vmatpush.msra.mxu0 %v15
  %77 = vmatmul.f32.gmra.mxu0 %v59
  %v78 = vpop.f32.mrf.mxu0
  %v79 = vadd.f32 %v55, %v78
  %80 = vdwg.mxu0
  %81 = vmatpush.msra.mxu0 0.0
  %82 = vmatpush.msra.mxu0 0.0
  %83 = vmatpush.msra.mxu0 0.0
  %84 = vmatpush.msra.mxu0 0.0
  %85 = vmatpush.msra.mxu0 0.0
  %86 = vmatpush.msra.mxu0 0.0
  %87 = vmatpush.msra.mxu0 0.0
  %88 = vmatpush.msra.mxu0 %v48
  %89 = vmatpush.msra.mxu0 %v44
  %90 = vmatpush.msra.mxu0 %v40
  %91 = vmatpush.msra.mxu0 %v36
  %92 = vmatpush.msra.mxu0 %v32
  %93 = vmatpush.msra.mxu0 %v28
  %94 = vmatpush.msra.mxu0 %v24
  %95 = vmatpush.msra.mxu0 %v20
  %96 = vmatpush.msra.mxu0 %v16
  %97 = vmatmul.f32.gmra.mxu0 %v59
  %v98 = vpop.f32.mrf.mxu0
  %v99 = vadd.f32 %v55, %v98
  %100 = vdwg.mxu0
  %101 = vmatpush.msra.mxu0 0.0
  %102 = vmatpush.msra.mxu0 0.0
  %103 = vmatpush.msra.mxu0 0.0
  %104 = vmatpush.msra.mxu0 0.0
  %105 = vmatpush.msra.mxu0 0.0
  %106 = vmatpush.msra.mxu0 0.0
  %107 = vmatpush.msra.mxu0 0.0
  %108 = vmatpush.msra.mxu0 %v49
  %109 = vmatpush.msra.mxu0 %v45
  %110 = vmatpush.msra.mxu0 %v41
  %111 = vmatpush.msra.mxu0 %v37
  %112 = vmatpush.msra.mxu0 %v33
  %113 = vmatpush.msra.mxu0 %v29
  %114 = vmatpush.msra.mxu0 %v25
  %115 = vmatpush.msra.mxu0 %v21
  %116 = vmatpush.msra.mxu0 %v17
  %117 = vmatmul.f32.gmra.mxu0 %v59
  %v118 = vpop.f32.mrf.mxu0
  %v119 = vadd.f32 %v55, %v118
  %120 = vdwg.mxu0
  %121 = vmatpush.msra.mxu0 0.0
  %122 = vmatpush.msra.mxu0 0.0
  %123 = vmatpush.msra.mxu0 0.0
  %124 = vmatpush.msra.mxu0 0.0
  %125 = vmatpush.msra.mxu0 0.0
  %126 = vmatpush.msra.mxu0 0.0
  %127 = vmatpush.msra.mxu0 0.0
  %128 = vmatpush.msra.mxu0 %v50
  %129 = vmatpush.msra.mxu0 %v46
  %130 = vmatpush.msra.mxu0 %v42
  %131 = vmatpush.msra.mxu0 %v38
  %132 = vmatpush.msra.mxu0 %v34
  %133 = vmatpush.msra.mxu0 %v30
  %134 = vmatpush.msra.mxu0 %v26
  %135 = vmatpush.msra.mxu0 %v22
  %136 = vmatpush.msra.mxu0 %v18
  %137 = vmatmul.f32.gmra.mxu0 %v59
  %v138 = vpop.f32.mrf.mxu0
  %v139 = vadd.f32 %v55, %v138
  %140 = vdwg.mxu0
  %141 = vst [vmem:[%s3] sm:$0xff] %v79
  %142 = vst [vmem:[%s3 + $0x8] sm:$0xff] %v99
  %143 = vst [vmem:[%s3 + $0x10] sm:$0xff] %v119
  %144 = vst [vmem:[%s3 + $0x18] sm:$0xff] %v139
  // Predicated region
  $region14: #{_lambda_.7} parent=0 // pred_check
    _
  $region15: #{_lambda_.7} parent=0 // pred_check_branch
    %146 = sbr.rel (0) target = $region17
  $region16: #{_lambda_.7} parent=0 // pred_region
    _
  $region17: #{_lambda_.7} parent=0 // pred_fallthru
    _
  // Predicated region
  $region18: #{_lambda_.7} parent=0 // pred_check
    _
  $region19: #{_lambda_.7} parent=0 // pred_check_branch
    %148 = sbr.rel (0) target = $region21
  $region20: #{_lambda_.7} parent=0 // pred_region
    _
  $region21: #{_lambda_.7} parent=0 // pred_fallthru
    _

</llo_original>
